<compile_context>
chip_gen: v7x
topology: tpu7x:2x2x1
jax: 0.10.0
libtpu: 0.0.40
codegen_flags: <defaults>
</compile_context>

<pallas_src>
import functools
import math

import jax
import jax.numpy as jnp
from jax.experimental import pallas as pl
from jax.experimental.pallas import tpu as pltpu

C_IN = 441
C_MID = 128
C_POOL = 64
BN_EPS = 1e-5


def _round_up(x, m):
    return ((x + m - 1) // m) * m


def _cdiv(a, b):
    return -(-a // b)


def deepcov_kernel(x_ref, w1_ref, b1_ref, w2_ref, bn2_ref, o_ref):
    # x_ref:  (1, 441, TPIX) f32   pixel tile (channels on sublanes, pixels on lanes)
    # w1_ref: (128, 441)     bf16  conv1x1 weight, rows permuted so the pool pair
    #                              (2c, 2c+1) lands at rows (c, c+64); bn1 scale folded
    # b1_ref: (128, 1)       f32   bn1 shift (same permutation)
    # w2_ref: (1, 64)        f32   last_conv weight with bn2 scale folded in
    # bn2_ref: (1,) SMEM     f32   bn2 shift
    # o_ref:  (1, 1, TPIX)   f32   lane-dense output tile
    # In-kernel bf16 cast: x streams from HBM as f32 exactly once; the cast is VPU work
    # hidden under the dominant input DMA.  Both matmuls accumulate in f32 on the MXU.
    x = x_ref[0].astype(jnp.bfloat16)                                   # (441, TPIX)
    h = jnp.dot(w1_ref[...], x, preferred_element_type=jnp.float32)     # (128, TPIX)
    h = h + b1_ref[...]                                                 # bn1 shift
    # MaxPool3d((2,1,1)) over the channel axis == max of the two sublane halves.
    hp = jnp.maximum(h[:C_POOL, :], h[C_POOL:, :])                      # (64, TPIX)
    z = jnp.dot(w2_ref[...], hp, preferred_element_type=jnp.float32)    # (1, TPIX)
    z = z + bn2_ref[0]                                                  # bn2 shift
    o_ref[0] = jax.nn.sigmoid(z)


@functools.partial(jax.jit, static_argnames=("tile",))
def deepcov_forward(x, w1, bn1_scale, bn1_shift, w2, bn2_scale, bn2_shift, tile=2048):
    N, C, H, W = x.shape
    assert C == C_IN
    HW = H * W

    # Pixel (lane) tile: multiple of 128, capped by the 128-padded spatial extent.
    tile = max(128, (int(tile) // 128) * 128)
    tpix = min(tile, _round_up(HW, 128))
    # Small inputs: shrink the tile so the grid has >= ~8 total steps (2 TCs on v7x
    # each get several pipelined steps instead of one un-pipelined step).
    while tpix > 128 and N * _cdiv(HW, tpix) < 8:
        tpix = _round_up(max(128, tpix // 2), 128)
    grid = (N, _cdiv(HW, tpix))

    # Consume NCHW directly: (N, 441, H*W).  Collapsing trailing dims is a free
    # bitcast -- no copy, no transpose, no dtype pass; the kernel reads f32 straight
    # from HBM.  No padding: Pallas edge-block masking handles HW % tpix != 0.
    xr = x.reshape(N, C_IN, HW)

    # Permute conv1x1 output channels so the pooled pair (2c, 2c+1) lands at rows
    # (c, c+64); the channel-pair max then becomes a max of the sublane halves.
    perm = jnp.concatenate([jnp.arange(0, C_MID, 2), jnp.arange(1, C_MID, 2)])
    w1m = w1.reshape(C_MID, C_IN)[perm]                                 # (128, 441)
    w1p = (w1m * bn1_scale[perm][:, None]).astype(jnp.bfloat16)         # fold bn1 scale
    b1 = bn1_shift[perm].reshape(C_MID, 1).astype(jnp.float32)
    w2r = (w2.reshape(1, C_POOL) * bn2_scale).astype(jnp.float32)       # fold bn2 scale
    bn2 = jnp.asarray(bn2_shift, jnp.float32).reshape(1)

    out = pl.pallas_call(
        deepcov_kernel,
        out_shape=jax.ShapeDtypeStruct((N, 1, HW), jnp.float32),
        grid_spec=pltpu.PrefetchScalarGridSpec(
            num_scalar_prefetch=0,
            grid=grid,
            in_specs=[
                pl.BlockSpec((1, C_IN, tpix), lambda n, j: (n, 0, j)),
                pl.BlockSpec((C_MID, C_IN), lambda n, j: (0, 0)),
                pl.BlockSpec((C_MID, 1), lambda n, j: (0, 0)),
                pl.BlockSpec((1, C_POOL), lambda n, j: (0, 0)),
                pl.BlockSpec(memory_space=pltpu.MemorySpace.SMEM),
            ],
            out_specs=pl.BlockSpec((1, 1, tpix), lambda n, j: (n, 0, j)),
        ),
        compiler_params=pltpu.CompilerParams(
            dimension_semantics=("parallel", "parallel")),
    )(xr, w1p, b1, w2r, bn2)

    # Output is already NCHW; reshape is free.
    return out.reshape(N, 1, H, W)


def reference_forward(x, w1, bn1_scale, bn1_shift, w2, bn2_scale, bn2_shift):
    # Full-f32 reference of the module's forward (inference-mode BN).
    h = jnp.einsum("nchw,oc->nohw", x, w1.reshape(C_MID, C_IN))
    h = h * bn1_scale[None, :, None, None] + bn1_shift[None, :, None, None]
    hp = jnp.maximum(h[:, 0::2], h[:, 1::2])   # MaxPool3d((2,1,1)) over channel dim
    z = jnp.einsum("nchw,oc->nohw", hp, w2.reshape(1, C_POOL))
    z = z * bn2_scale + bn2_shift
    return jax.nn.sigmoid(z)


def make_params():
    key = jax.random.PRNGKey(0)
    k1, k2 = jax.random.split(key)
    gain = math.sqrt(2.0)  # calculate_gain('relu')
    # conv1x1: (128, 441, 1, 1), xavier_uniform
    bound1 = gain * math.sqrt(6.0 / (C_IN + C_MID))
    w1 = jax.random.uniform(k1, (C_MID, C_IN, 1, 1), jnp.float32, -bound1, bound1)
    # last_conv: (1, 64, 1, 1), xavier_uniform
    bound2 = gain * math.sqrt(6.0 / (C_POOL + 1))
    w2 = jax.random.uniform(k2, (1, C_POOL, 1, 1), jnp.float32, -bound2, bound2)
    # BatchNorm (inference mode with fresh stats): scale = 1/sqrt(var+eps), shift = 0
    inv = 1.0 / math.sqrt(1.0 + BN_EPS)
    bn1_scale = jnp.full((C_MID,), inv, jnp.float32)
    bn1_shift = jnp.zeros((C_MID,), jnp.float32)
    bn2_scale = jnp.float32(inv)
    bn2_shift = jnp.float32(0.0)
    return w1, bn1_scale, bn1_shift, w2, bn2_scale, bn2_shift


if __name__ == "__main__":
    key = jax.random.PRNGKey(0)
    x = jax.random.normal(jax.random.fold_in(key, 7), (2, C_IN, 16, 16), jnp.float32)

    params = make_params()
    out = deepcov_forward(x, *params)
    out = jax.block_until_ready(out)

    ref = reference_forward(x, *params)
    assert out.shape == (2, 1, 16, 16), out.shape
    # bf16 matmul of x/w1 (f32 accumulation) vs f32 reference -> loosened tolerance.
    if not jnp.allclose(out, ref, atol=2e-2, rtol=0.0):
        max_err = float(jnp.max(jnp.abs(out - ref)))
        raise AssertionError(f"Pallas kernel does not match JAX reference (max|diff|={max_err})")
    print("KERNEL_OK")
</pallas_src>

<mosaic_0001>
module attributes {stable_mosaic.version = 11 : i64} {
  func.func @deepcov_kernel(%arg0: i32, %arg1: i32, %arg2: memref<1x441x128xf32, #tpu.memory_space<vmem>>, %arg3: memref<128x441xbf16, #tpu.memory_space<vmem>>, %arg4: memref<128x1xf32, #tpu.memory_space<vmem>>, %arg5: memref<1x64xf32, #tpu.memory_space<vmem>>, %arg6: memref<1xf32, #tpu.memory_space<smem>>, %arg7: memref<1x1x128xf32, #tpu.memory_space<vmem>>) attributes {dimension_semantics = [#tpu.dimension_semantics<parallel>, #tpu.dimension_semantics<parallel>], iteration_bounds = array<i64: 2, 2>, scalar_prefetch = 0 : i64, scratch_operands = 0 : i64, tpu.core_type = #tpu.core_type<tc>, window_params = [{transform_indices = @transform_0, window_bounds = array<i64: 1, 441, 128>}, {pipeline_mode = #tpu.pipeline_mode<synchronous>, transform_indices = @transform_1, window_bounds = array<i64: 128, 441>}, {pipeline_mode = #tpu.pipeline_mode<synchronous>, transform_indices = @transform_2, window_bounds = array<i64: 128, 1>}, {pipeline_mode = #tpu.pipeline_mode<synchronous>, transform_indices = @transform_3, window_bounds = array<i64: 1, 64>}, {transform_indices = @transform_4, window_bounds = array<i64: 1>}, {transform_indices = @transform_5, window_bounds = array<i64: 1, 1, 128>}]} {
    %c0 = arith.constant 0 : index
    %c0_0 = arith.constant 0 : index
    %c0_1 = arith.constant 0 : index
    %0 = vector.load %arg2[%c0, %c0_0, %c0_1] : memref<1x441x128xf32, #tpu.memory_space<vmem>>, vector<1x441x128xf32>
    %1 = vector.shape_cast %0 : vector<1x441x128xf32> to vector<441x128xf32>
    %2 = arith.truncf %1 : vector<441x128xf32> to vector<441x128xbf16>
    %c0_2 = arith.constant 0 : index
    %c0_3 = arith.constant 0 : index
    %3 = vector.load %arg3[%c0_2, %c0_3] : memref<128x441xbf16, #tpu.memory_space<vmem>>, vector<128x441xbf16>
    %cst = arith.constant dense<0.000000e+00> : vector<128x128xf32>
    %4 = tpu.matmul %3, %2, %cst {dimension_numbers = #tpu.dot_dimension_numbers<[1], [0], [0], [1], [0, 0, 1, 1], [], []>} : vector<128x441xbf16>, vector<441x128xbf16>, vector<128x128xf32> -> vector<128x128xf32>
    %c0_4 = arith.constant 0 : index
    %c0_5 = arith.constant 0 : index
    %5 = vector.load %arg4[%c0_4, %c0_5] : memref<128x1xf32, #tpu.memory_space<vmem>>, vector<128x1xf32>
    %6 = vector.broadcast %5 : vector<128x1xf32> to vector<128x128xf32>
    %7 = arith.addf %4, %6 : vector<128x128xf32>
    %8 = vector.extract_strided_slice %7 {offsets = [0, 0], sizes = [64, 128], strides = [1, 1]} : vector<128x128xf32> to vector<64x128xf32>
    %9 = vector.extract_strided_slice %7 {offsets = [64, 0], sizes = [64, 128], strides = [1, 1]} : vector<128x128xf32> to vector<64x128xf32>
    %10 = arith.maximumf %8, %9 : vector<64x128xf32>
    %c0_6 = arith.constant 0 : index
    %c0_7 = arith.constant 0 : index
    %11 = vector.load %arg5[%c0_6, %c0_7] : memref<1x64xf32, #tpu.memory_space<vmem>>, vector<1x64xf32>
    %cst_8 = arith.constant dense<0.000000e+00> : vector<1x128xf32>
    %12 = tpu.matmul %11, %10, %cst_8 {dimension_numbers = #tpu.dot_dimension_numbers<[1], [0], [0], [1], [0, 0, 1, 1], [], []>} : vector<1x64xf32>, vector<64x128xf32>, vector<1x128xf32> -> vector<1x128xf32>
    %c0_9 = arith.constant 0 : index
    %13 = memref.load %arg6[%c0_9] : memref<1xf32, #tpu.memory_space<smem>>
    %14 = vector.broadcast %13 : f32 to vector<1x128xf32>
    %15 = arith.addf %12, %14 : vector<1x128xf32>
    %16 = arith.negf %15 : vector<1x128xf32>
    %17 = math.exp %16 : vector<1x128xf32>
    %cst_10 = arith.constant 1.000000e+00 : f32
    %18 = vector.broadcast %cst_10 : f32 to vector<1x128xf32>
    %19 = arith.addf %18, %17 : vector<1x128xf32>
    %20 = arith.divf %18, %19 : vector<1x128xf32>
    %c0_11 = arith.constant 0 : index
    %c0_12 = arith.constant 0 : index
    %c0_13 = arith.constant 0 : index
    %21 = vector.load %arg7[%c0_11, %c0_12, %c0_13] : memref<1x1x128xf32, #tpu.memory_space<vmem>>, vector<1x1x128xf32>
    %22 = vector.shape_cast %21 : vector<1x1x128xf32> to vector<1x128xf32>
    %23 = vector.shape_cast %20 : vector<1x128xf32> to vector<1x1x128xf32>
    tpu.vector_store %arg7[%c0_11, %c0_12, %c0_13], %23 {strides = array<i32>} : memref<1x1x128xf32, #tpu.memory_space<vmem>>, vector<1x1x128xf32>,
    return
  }
  func.func @transform_0(%arg0: i32, %arg1: i32) -> (i32, i32, i32) {
    %c0_i32 = arith.constant 0 : i32
    %c0_i32_0 = arith.constant 0 : i32
    return %arg0, %c0_i32, %arg1 : i32, i32, i32
  }
  func.func @transform_1(%arg0: i32, %arg1: i32) -> (i32, i32) {
    %c0_i32 = arith.constant 0 : i32
    %c0_i32_0 = arith.constant 0 : i32
    %c0_i32_1 = arith.constant 0 : i32
    return %c0_i32, %c0_i32_0 : i32, i32
  }
  func.func @transform_2(%arg0: i32, %arg1: i32) -> (i32, i32) {
    %c0_i32 = arith.constant 0 : i32
    %c0_i32_0 = arith.constant 0 : i32
    %c0_i32_1 = arith.constant 0 : i32
    return %c0_i32, %c0_i32_0 : i32, i32
  }
  func.func @transform_3(%arg0: i32, %arg1: i32) -> (i32, i32) {
    %c0_i32 = arith.constant 0 : i32
    %c0_i32_0 = arith.constant 0 : i32
    %c0_i32_1 = arith.constant 0 : i32
    return %c0_i32, %c0_i32_0 : i32, i32
  }
  func.func @transform_4(%arg0: i32, %arg1: i32) -> i32 {
    %c0_i32 = arith.constant 0 : i32
    %c0_i32_0 = arith.constant 0 : i32
    return %c0_i32 : i32
  }
  func.func @transform_5(%arg0: i32, %arg1: i32) -> (i32, i32, i32) {
    %c0_i32 = arith.constant 0 : i32
    %c0_i32_0 = arith.constant 0 : i32
    return %arg0, %c0_i32, %arg1 : i32, i32, i32
  }
}

</mosaic_0001>

<llo_original>
// kernel: deepcov_forward.1
$region0: #{deepcov_forward.1}
  #allocation0 [shape = 'u32[]', space=smem, size = 0x4, offset = 0x4, fixed_abs, tag = 'smem constant byte address 0x4 - core index']
  #allocation1 [shape = 'u32[144,128]{1,0:T(1,128)}', space=vmem, size = 0x12000, scoped, tag = 'internal scratch']
  #allocation2 [shape = 'f32[1]{0:T(128)S(6)}', space=smem, size = 0x200, scoped, tag = 'scoped memory for deepcov_forward.1']
  %s0 = inlined_call_operand.vmem [shape: f32[2,441,256], index: 0, kind: input, shape index: {}]
  %s1 = inlined_call_operand.vmem [shape: bf16[128,441], index: 1, kind: input, shape index: {}]
  %s2 = inlined_call_operand.vmem [shape: f32[128,1], index: 2, kind: input, shape index: {}]
  %s3 = inlined_call_operand.vmem [shape: f32[1,64], index: 3, kind: input, shape index: {}]
  %s4 = inlined_call_operand.<no memory space> [shape: f32[1], index: 4, kind: input, shape index: {}]
  %s5 = inlined_call_operand.vmem [shape: f32[2,1,256], index: 5, kind: output, shape index: {}]
  %s6 = sld [smem:[#allocation0]]
  $region91: #{deepcov_forward.1} parent=0
    _
  %s8 = ssub.s32 1, %s6
  %s9 = scalar_select 0, %s8, %s6
  %10 = sst [smem:[#allocation2]] %s4
  $region1: #{deepcov_forward.1} parent=0
    #allocation3 [shape = 'u8[458752]{0}', space=vmem, size = 0x70000, scoped, tag = 'input window, operand 0']
    loop: start=0, step=1, limit=6
    $region2: #{deepcov_forward.1} parent=1 // loop_pre_header
      _
    $region3: #{deepcov_forward.1} parent=1 // loop_header
      %s12 = sphi 0, %s16
      %p13 = scmp.ge.s32.totalorder %s12, 6
      %s19 = sphi 0, %s31
      %s20 = sphi 0, %s27
      %s21 = sphi 0, %s19
      %s22 = sphi 0, %s20
      %s23 = sphi 0, %s21
      %s24 = sphi 0, %s22
      %s36 = sphi 0, %s38
      %s39 = sphi 0, %s36
      %s40 = sphi 0, %s39
      %s56 = sphi 0, %s40
      %s60 = sphi 0, %s60
      %s62 = sphi 0, %s60
      %s63 = sphi 0, %s62
      %s77 = sphi 0, %s63
      %s81 = sphi 0, %s81
      %s83 = sphi 0, %s81
      %s84 = sphi 0, %s83
      %s98 = sphi 0, %s84
      %s102 = sphi 0, %s102
      %s104 = sphi 0, %s102
      %s105 = sphi 0, %s104
      %s119 = sphi 0, %s105
      %s123 = sphi 0, %s123
      %s125 = sphi 0, %s123
      %s126 = sphi 0, %s125
      %s140 = sphi 0, %s126
      %s148 = sphi 0, %s150
      %s151 = sphi 0, %s148
      %s152 = sphi 0, %s151
      %s168 = sphi 0, %s152
    $region4: #{deepcov_forward.1} parent=1 // loop_header_branch
      %15 = sbr.rel (%p13) target = $region8
    $region5: #{deepcov_forward.1} parent=1 // loop_body
      %s17 = ssub.s32 %s12, 1
      %s18 = ssub.s32 %s12, 2
      %s25 = sadd.s32 1, %s20
      %p26 = scmp.ge.s32.totalorder %s25, 2
      %s27 = scalar_select %p26, 0, %s25
      %s28 = sadd.s32 1, %s19
      %s29 = scalar_select %p26, %s28, %s19
      %p30 = scmp.ge.s32.totalorder %s29, 2
      %s31 = scalar_select %p30, 0, %s29
      %s32 = ssub.s32 %s19, %s31
      %s33 = ssub.s32 %s20, %s27
      %s34 = sor.u32 %s32, %s33
      %p35 = scmp.eq.s32.totalorder %s34, 0
      %s37 = sadd.s32 %s36, 1
      %s38 = scalar_select %p35, %s36, %s37
      %p41 = pneg %p35
      %p42 = scmp.eq.s32.totalorder %s12, 3
      %p43 = por %p41, %p42
      %p44 = scmp.ne.s32.totalorder %s36, %s39
      %p45 = scmp.eq.s32.totalorder %s12, 0
      %p46 = por %p44, %p45
      %p47 = scmp.ne.s32.totalorder %s36, %s39
      %p48 = scmp.eq.s32.totalorder %s17, 3
      %p49 = por %p47, %p48
      %p50 = scmp.ne.s32.totalorder %s39, %s40
      %p51 = scmp.eq.s32.totalorder %s17, 0
      %p52 = por %p50, %p51
      %p53 = scmp.ne.s32.totalorder %s39, %s40
      %p54 = scmp.eq.s32.totalorder %s18, 3
      %p55 = por %p53, %p54
      %p57 = scmp.ne.s32.totalorder %s40, %s56
      %p58 = scmp.eq.s32.totalorder %s18, 0
      %p59 = por %p57, %p58
      %s61 = sadd.s32 %s60, 1
      %p64 = scmp.eq.s32.totalorder %s12, 3
      %p65 = scmp.ne.s32.totalorder %s60, %s62
      %p66 = scmp.eq.s32.totalorder %s12, 0
      %p67 = por %p65, %p66
      %p68 = scmp.ne.s32.totalorder %s60, %s62
      %p69 = scmp.eq.s32.totalorder %s17, 3
      %p70 = por %p68, %p69
      %p71 = scmp.ne.s32.totalorder %s62, %s63
      %p72 = scmp.eq.s32.totalorder %s17, 0
      %p73 = por %p71, %p72
      %p74 = scmp.ne.s32.totalorder %s62, %s63
      %p75 = scmp.eq.s32.totalorder %s18, 3
      %p76 = por %p74, %p75
      %p78 = scmp.ne.s32.totalorder %s63, %s77
      %p79 = scmp.eq.s32.totalorder %s18, 0
      %p80 = por %p78, %p79
      %s82 = sadd.s32 %s81, 1
      %p85 = scmp.eq.s32.totalorder %s12, 3
      %p86 = scmp.ne.s32.totalorder %s81, %s83
      %p87 = scmp.eq.s32.totalorder %s12, 0
      %p88 = por %p86, %p87
      %p89 = scmp.ne.s32.totalorder %s81, %s83
      %p90 = scmp.eq.s32.totalorder %s17, 3
      %p91 = por %p89, %p90
      %p92 = scmp.ne.s32.totalorder %s83, %s84
      %p93 = scmp.eq.s32.totalorder %s17, 0
      %p94 = por %p92, %p93
      %p95 = scmp.ne.s32.totalorder %s83, %s84
      %p96 = scmp.eq.s32.totalorder %s18, 3
      %p97 = por %p95, %p96
      %p99 = scmp.ne.s32.totalorder %s84, %s98
      %p100 = scmp.eq.s32.totalorder %s18, 0
      %p101 = por %p99, %p100
      %s103 = sadd.s32 %s102, 1
      %p106 = scmp.eq.s32.totalorder %s12, 3
      %p107 = scmp.ne.s32.totalorder %s102, %s104
      %p108 = scmp.eq.s32.totalorder %s12, 0
      %p109 = por %p107, %p108
      %p110 = scmp.ne.s32.totalorder %s102, %s104
      %p111 = scmp.eq.s32.totalorder %s17, 3
      %p112 = por %p110, %p111
      %p113 = scmp.ne.s32.totalorder %s104, %s105
      %p114 = scmp.eq.s32.totalorder %s17, 0
      %p115 = por %p113, %p114
      %p116 = scmp.ne.s32.totalorder %s104, %s105
      %p117 = scmp.eq.s32.totalorder %s18, 3
      %p118 = por %p116, %p117
      %p120 = scmp.ne.s32.totalorder %s105, %s119
      %p121 = scmp.eq.s32.totalorder %s18, 0
      %p122 = por %p120, %p121
      %s124 = sadd.s32 %s123, 1
      %p127 = scmp.eq.s32.totalorder %s12, 3
      %p128 = scmp.ne.s32.totalorder %s123, %s125
      %p129 = scmp.eq.s32.totalorder %s12, 0
      %p130 = por %p128, %p129
      %p131 = scmp.ne.s32.totalorder %s123, %s125
      %p132 = scmp.eq.s32.totalorder %s17, 3
      %p133 = por %p131, %p132
      %p134 = scmp.ne.s32.totalorder %s125, %s126
      %p135 = scmp.eq.s32.totalorder %s17, 0
      %p136 = por %p134, %p135
      %p137 = scmp.ne.s32.totalorder %s125, %s126
      %p138 = scmp.eq.s32.totalorder %s18, 3
      %p139 = por %p137, %p138
      %p141 = scmp.ne.s32.totalorder %s126, %s140
      %p142 = scmp.eq.s32.totalorder %s18, 0
      %p143 = por %p141, %p142
      %s144 = ssub.s32 %s19, %s31
      %s145 = ssub.s32 %s20, %s27
      %s146 = sor.u32 %s144, %s145
      %p147 = scmp.eq.s32.totalorder %s146, 0
      %s149 = sadd.s32 %s148, 1
      %s150 = scalar_select %p147, %s148, %s149
      %p153 = pneg %p147
      %p154 = scmp.eq.s32.totalorder %s12, 3
      %p155 = por %p153, %p154
      %p156 = scmp.ne.s32.totalorder %s148, %s151
      %p157 = scmp.eq.s32.totalorder %s12, 0
      %p158 = por %p156, %p157
      %p159 = scmp.ne.s32.totalorder %s148, %s151
      %p160 = scmp.eq.s32.totalorder %s17, 3
      %p161 = por %p159, %p160
      %p162 = scmp.ne.s32.totalorder %s151, %s152
      %p163 = scmp.eq.s32.totalorder %s17, 0
      %p164 = por %p162, %p163
      %p165 = scmp.ne.s32.totalorder %s151, %s152
      %p166 = scmp.eq.s32.totalorder %s18, 3
      %p167 = por %p165, %p166
      %p169 = scmp.ne.s32.totalorder %s152, %s168
      %p170 = scmp.eq.s32.totalorder %s18, 0
      %p171 = por %p169, %p170
      %p172 = scmp.le.s32.totalorder 1, %s12
      %p173 = scmp.lt.s32.totalorder %s12, 5
      %p174 = pnand %p172, %p173
      %p175 = pneg %p174
      // Predicated region
      $region9: #{deepcov_forward.1} parent=5 // pred_check
        _
      $region10: #{deepcov_forward.1} parent=5 // pred_check_branch
        %177 = sbr.rel (%p174) target = $region12
      $region11: #{deepcov_forward.1} parent=5 // pred_region
        %s178 = ssub.s32 %s12, 1
        // Predicated region
        $region13: #{deepcov_forward.1} parent=11 // pred_check
          %p179 = pneg %p73
        $region14: #{deepcov_forward.1} parent=11 // pred_check_branch
          %181 = sbr.rel (%p179) target = $region16
        $region15: #{deepcov_forward.1} parent=11 // pred_region
          _
        $region16: #{deepcov_forward.1} parent=11 // pred_fallthru
          _
        // Predicated region
        $region17: #{deepcov_forward.1} parent=11 // pred_check
          %p182 = pneg %p94
        $region18: #{deepcov_forward.1} parent=11 // pred_check_branch
          %184 = sbr.rel (%p182) target = $region20
        $region19: #{deepcov_forward.1} parent=11 // pred_region
          _
        $region20: #{deepcov_forward.1} parent=11 // pred_fallthru
          _
        // Predicated region
        $region21: #{deepcov_forward.1} parent=11 // pred_check
          %p185 = pneg %p115
        $region22: #{deepcov_forward.1} parent=11 // pred_check_branch
          %187 = sbr.rel (%p185) target = $region24
        $region23: #{deepcov_forward.1} parent=11 // pred_region
          _
        $region24: #{deepcov_forward.1} parent=11 // pred_fallthru
          _
        // Predicated region
        $region25: #{deepcov_forward.1} parent=11 // pred_check
          %p188 = pneg %p136
        $region26: #{deepcov_forward.1} parent=11 // pred_check_branch
          %190 = sbr.rel (%p188) target = $region28
        $region27: #{deepcov_forward.1} parent=11 // pred_region
          _
        $region28: #{deepcov_forward.1} parent=11 // pred_fallthru
          _
      $region12: #{deepcov_forward.1} parent=5 // pred_fallthru
        _
      %p191 = scmp.lt.s32.totalorder %s12, 4
      // Predicated region
      $region29: #{deepcov_forward.1} parent=5 // pred_check
        %p192 = pneg %p191
      $region30: #{deepcov_forward.1} parent=5 // pred_check_branch
        %194 = sbr.rel (%p192) target = $region32
      $region31: #{deepcov_forward.1} parent=5 // pred_region
        // Predicated region
        $region33: #{deepcov_forward.1} parent=31 // pred_check
          %p195 = pneg %p46
        $region34: #{deepcov_forward.1} parent=31 // pred_check_branch
          %197 = sbr.rel (%p195) target = $region36
        $region35: #{deepcov_forward.1} parent=31 // pred_region
          %s198 = sand.u32 %s36, 1
          %s199 = sand.u32 %s36, 1
          %s200 = smul.addr %s199, 448
          %s201 = scalar_lea.vmem [#allocation3], %s200
          %s202 = smul.addr %s19, 112
          %s203 = sadd.s32 %s20, %s202
          %s204 = smul.addr %s203, 8
          %s205 = scalar_lea.vmem %s0, %s204
          // Predicated region
          $region37: #{deepcov_forward.1} parent=35 // pred_check
            _
          $region38: #{deepcov_forward.1} parent=35 // pred_check_branch
            %207 = sbr.rel (0) target = $region40
          $region39: #{deepcov_forward.1} parent=35 // pred_region
            // Predicated region
            $region41: #{deepcov_forward.1} parent=39 // pred_check
              _
            $region42: #{deepcov_forward.1} parent=39 // pred_check_branch
              %209 = sbr.rel (0) target = $region44
            $region43: #{deepcov_forward.1} parent=39 // pred_region
              // Predicated region
              $region56: #{deepcov_forward.1} parent=43 // pred_check
                _
              $region57: #{deepcov_forward.1} parent=43 // pred_check_branch
                %334 = sbr.rel (0) target = $region59
              $region58: #{deepcov_forward.1} parent=43 // pred_region
                loop: start=0, step=1, limit=1
                $region60: #{deepcov_forward.1} parent=58 // loop_pre_header
                  _
                $region61: #{deepcov_forward.1} parent=58 // loop_header
                  %s336 = sphi 0, %s340
                  %p337 = scmp.ge.s32.totalorder %s336, 1
                  %s341 = sphi %s205, %s205
                  %s342 = sphi %s201, %s201
                $region62: #{deepcov_forward.1} parent=58 // loop_header_branch
                  %339 = sbr.rel (%p337) target = $region66
                $region63: #{deepcov_forward.1} parent=58 // loop_body
                  %v343 = vld [vmem:[%s341] sm:$0xff]
                  %344 = vst [vmem:[%s342] sm:$0xff] %v343
                  %v345 = vld [vmem:[%s341 + $0x10] sm:$0xff]
                  %346 = vst [vmem:[%s342 + $0x8] sm:$0xff] %v345
                  %v347 = vld [vmem:[%s341 + $0x20] sm:$0xff]
                  %348 = vst [vmem:[%s342 + $0x10] sm:$0xff] %v347
                  %v349 = vld [vmem:[%s341 + $0x30] sm:$0xff]
                  %350 = vst [vmem:[%s342 + $0x18] sm:$0xff] %v349
                  %v351 = vld [vmem:[%s341 + $0x40] sm:$0xff]
                  %352 = vst [vmem:[%s342 + $0x20] sm:$0xff] %v351
                  %v353 = vld [vmem:[%s341 + $0x50] sm:$0xff]
                  %354 = vst [vmem:[%s342 + $0x28] sm:$0xff] %v353
                  %v355 = vld [vmem:[%s341 + $0x60] sm:$0xff]
                  %356 = vst [vmem:[%s342 + $0x30] sm:$0xff] %v355
                  %v357 = vld [vmem:[%s341 + $0x70] sm:$0xff]
                  %358 = vst [vmem:[%s342 + $0x38] sm:$0xff] %v357
                  %v359 = vld [vmem:[%s341 + $0x80] sm:$0xff]
                  %360 = vst [vmem:[%s342 + $0x40] sm:$0xff] %v359
                  %v361 = vld [vmem:[%s341 + $0x90] sm:$0xff]
                  %362 = vst [vmem:[%s342 + $0x48] sm:$0xff] %v361
                  %v363 = vld [vmem:[%s341 + $0xa0] sm:$0xff]
                  %364 = vst [vmem:[%s342 + $0x50] sm:$0xff] %v363
                  %v365 = vld [vmem:[%s341 + $0xb0] sm:$0xff]
                  %366 = vst [vmem:[%s342 + $0x58] sm:$0xff] %v365
                  %v367 = vld [vmem:[%s341 + $0xc0] sm:$0xff]
                  %368 = vst [vmem:[%s342 + $0x60] sm:$0xff] %v367
                  %v369 = vld [vmem:[%s341 + $0xd0] sm:$0xff]
                  %370 = vst [vmem:[%s342 + $0x68] sm:$0xff] %v369
                  %v371 = vld [vmem:[%s341 + $0xe0] sm:$0xff]
                  %372 = vst [vmem:[%s342 + $0x70] sm:$0xff] %v371
                  %v373 = vld [vmem:[%s341 + $0xf0] sm:$0xff]
                  %374 = vst [vmem:[%s342 + $0x78] sm:$0xff] %v373
                  %v375 = vld [vmem:[%s341 + $0x100] sm:$0xff]
                  %376 = vst [vmem:[%s342 + $0x80] sm:$0xff] %v375
                  %v377 = vld [vmem:[%s341 + $0x110] sm:$0xff]
                  %378 = vst [vmem:[%s342 + $0x88] sm:$0xff] %v377
                  %v379 = vld [vmem:[%s341 + $0x120] sm:$0xff]
                  %380 = vst [vmem:[%s342 + $0x90] sm:$0xff] %v379
                  %v381 = vld [vmem:[%s341 + $0x130] sm:$0xff]
                  %382 = vst [vmem:[%s342 + $0x98] sm:$0xff] %v381
                  %v383 = vld [vmem:[%s341 + $0x140] sm:$0xff]
                  %384 = vst [vmem:[%s342 + $0xa0] sm:$0xff] %v383
                  %v385 = vld [vmem:[%s341 + $0x150] sm:$0xff]
                  %386 = vst [vmem:[%s342 + $0xa8] sm:$0xff] %v385
                  %v387 = vld [vmem:[%s341 + $0x160] sm:$0xff]
                  %388 = vst [vmem:[%s342 + $0xb0] sm:$0xff] %v387
                  %v389 = vld [vmem:[%s341 + $0x170] sm:$0xff]
                  %390 = vst [vmem:[%s342 + $0xb8] sm:$0xff] %v389
                  %v391 = vld [vmem:[%s341 + $0x180] sm:$0xff]
                  %392 = vst [vmem:[%s342 + $0xc0] sm:$0xff] %v391
                  %v393 = vld [vmem:[%s341 + $0x190] sm:$0xff]
                  %394 = vst [vmem:[%s342 + $0xc8] sm:$0xff] %v393
                  %v395 = vld [vmem:[%s341 + $0x1a0] sm:$0xff]
                  %396 = vst [vmem:[%s342 + $0xd0] sm:$0xff] %v395
                  %v397 = vld [vmem:[%s341 + $0x1b0] sm:$0xff]
                  %398 = vst [vmem:[%s342 + $0xd8] sm:$0xff] %v397
                  %v399 = vld [vmem:[%s341 + $0x1c0] sm:$0xff]
                  %400 = vst [vmem:[%s342 + $0xe0] sm:$0xff] %v399
                  %v401 = vld [vmem:[%s341 + $0x1d0] sm:$0xff]
                  %402 = vst [vmem:[%s342 + $0xe8] sm:$0xff] %v401
                  %v403 = vld [vmem:[%s341 + $0x1e0] sm:$0xff]
                  %404 = vst [vmem:[%s342 + $0xf0] sm:$0xff] %v403
                  %v405 = vld [vmem:[%s341 + $0x1f0] sm:$0xff]
                  %406 = vst [vmem:[%s342 + $0xf8] sm:$0xff] %v405
                  %v407 = vld [vmem:[%s341 + $0x200] sm:$0xff]
                  %408 = vst [vmem:[%s342 + $0x100] sm:$0xff] %v407
                  %v409 = vld [vmem:[%s341 + $0x210] sm:$0xff]
                  %410 = vst [vmem:[%s342 + $0x108] sm:$0xff] %v409
                  %v411 = vld [vmem:[%s341 + $0x220] sm:$0xff]
                  %412 = vst [vmem:[%s342 + $0x110] sm:$0xff] %v411
                  %v413 = vld [vmem:[%s341 + $0x230] sm:$0xff]
                  %414 = vst [vmem:[%s342 + $0x118] sm:$0xff] %v413
                  %v415 = vld [vmem:[%s341 + $0x240] sm:$0xff]
                  %416 = vst [vmem:[%s342 + $0x120] sm:$0xff] %v415
                  %v417 = vld [vmem:[%s341 + $0x250] sm:$0xff]
                  %418 = vst [vmem:[%s342 + $0x128] sm:$0xff] %v417
                  %v419 = vld [vmem:[%s341 + $0x260] sm:$0xff]
                  %420 = vst [vmem:[%s342 + $0x130] sm:$0xff] %v419
                  %v421 = vld [vmem:[%s341 + $0x270] sm:$0xff]
                  %422 = vst [vmem:[%s342 + $0x138] sm:$0xff] %v421
                  %v423 = vld [vmem:[%s341 + $0x280] sm:$0xff]
                  %424 = vst [vmem:[%s342 + $0x140] sm:$0xff] %v423
                  %v425 = vld [vmem:[%s341 + $0x290] sm:$0xff]
                  %426 = vst [vmem:[%s342 + $0x148] sm:$0xff] %v425
                  %v427 = vld [vmem:[%s341 + $0x2a0] sm:$0xff]
                  %428 = vst [vmem:[%s342 + $0x150] sm:$0xff] %v427
                  %v429 = vld [vmem:[%s341 + $0x2b0] sm:$0xff]
                  %430 = vst [vmem:[%s342 + $0x158] sm:$0xff] %v429
                  %v431 = vld [vmem:[%s341 + $0x2c0] sm:$0xff]
                  %432 = vst [vmem:[%s342 + $0x160] sm:$0xff] %v431
                  %v433 = vld [vmem:[%s341 + $0x2d0] sm:$0xff]
                  %434 = vst [vmem:[%s342 + $0x168] sm:$0xff] %v433
                  %v435 = vld [vmem:[%s341 + $0x2e0] sm:$0xff]
                  %436 = vst [vmem:[%s342 + $0x170] sm:$0xff] %v435
                  %v437 = vld [vmem:[%s341 + $0x2f0] sm:$0xff]
                  %438 = vst [vmem:[%s342 + $0x178] sm:$0xff] %v437
                  %v439 = vld [vmem:[%s341 + $0x300] sm:$0xff]
                  %440 = vst [vmem:[%s342 + $0x180] sm:$0xff] %v439
                  %v441 = vld [vmem:[%s341 + $0x310] sm:$0xff]
                  %442 = vst [vmem:[%s342 + $0x188] sm:$0xff] %v441
                  %v443 = vld [vmem:[%s341 + $0x320] sm:$0xff]
                  %444 = vst [vmem:[%s342 + $0x190] sm:$0xff] %v443
                  %v445 = vld [vmem:[%s341 + $0x330] sm:$0xff]
                  %446 = vst [vmem:[%s342 + $0x198] sm:$0xff] %v445
                  %v447 = vld [vmem:[%s341 + $0x340] sm:$0xff]
                  %448 = vst [vmem:[%s342 + $0x1a0] sm:$0xff] %v447
                  %v449 = vld [vmem:[%s341 + $0x350] sm:$0xff]
                  %450 = vst [vmem:[%s342 + $0x1a8] sm:$0xff] %v449
                  %v451 = vld [vmem:[%s341 + $0x360] sm:$0xff]
                  %452 = vst [vmem:[%s342 + $0x1b0] sm:$0xff] %v451
                  %v453 = vld [vmem:[%s341 + $0x370] sm:$0xff]
                  %454 = vst [vmem:[%s342 + $0x1b8] sm:$0xff] %v453
                $region64: #{deepcov_forward.1} parent=58 // loop_footer
                  %s340 = sadd.s32 1, %s336
                $region65: #{deepcov_forward.1} parent=58 // loop_footer_branch
                  %335 = sbr.rel target = $region61
                $region66: #{deepcov_forward.1} parent=58 // loop_exit
                  _
              $region59: #{deepcov_forward.1} parent=43 // pred_fallthru
                _
              // Predicated region
              $region67: #{deepcov_forward.1} parent=43 // pred_check
                _
              $region68: #{deepcov_forward.1} parent=43 // pred_check_branch
                %456 = sbr.rel target = $region70
              $region69: #{deepcov_forward.1} parent=43 // pred_region
                _
              $region70: #{deepcov_forward.1} parent=43 // pred_fallthru
                _
            $region44: #{deepcov_forward.1} parent=39 // pred_fallthru
              _
            // Predicated region
            $region45: #{deepcov_forward.1} parent=39 // pred_check
              _
            $region46: #{deepcov_forward.1} parent=39 // pred_check_branch
              %211 = sbr.rel target = $region48
            $region47: #{deepcov_forward.1} parent=39 // pred_region
              loop: start=0, step=1, limit=1
              $region49: #{deepcov_forward.1} parent=47 // loop_pre_header
                _
              $region50: #{deepcov_forward.1} parent=47 // loop_header
                %s214 = sphi 0, %s218
                %p215 = scmp.ge.s32.totalorder %s214, 1
                %s219 = sphi %s205, %s205
                %s220 = sphi %s201, %s201
              $region51: #{deepcov_forward.1} parent=47 // loop_header_branch
                %217 = sbr.rel (%p215) target = $region55
              $region52: #{deepcov_forward.1} parent=47 // loop_body
                %v221 = vld [vmem:[%s219] sm:$0xff]
                %222 = vst [vmem:[%s220] sm:$0xff] %v221
                %v223 = vld [vmem:[%s219 + $0x10] sm:$0xff]
                %224 = vst [vmem:[%s220 + $0x8] sm:$0xff] %v223
                %v225 = vld [vmem:[%s219 + $0x20] sm:$0xff]
                %226 = vst [vmem:[%s220 + $0x10] sm:$0xff] %v225
                %v227 = vld [vmem:[%s219 + $0x30] sm:$0xff]
                %228 = vst [vmem:[%s220 + $0x18] sm:$0xff] %v227
                %v229 = vld [vmem:[%s219 + $0x40] sm:$0xff]
                %230 = vst [vmem:[%s220 + $0x20] sm:$0xff] %v229
                %v231 = vld [vmem:[%s219 + $0x50] sm:$0xff]
                %232 = vst [vmem:[%s220 + $0x28] sm:$0xff] %v231
                %v233 = vld [vmem:[%s219 + $0x60] sm:$0xff]
                %234 = vst [vmem:[%s220 + $0x30] sm:$0xff] %v233
                %v235 = vld [vmem:[%s219 + $0x70] sm:$0xff]
                %236 = vst [vmem:[%s220 + $0x38] sm:$0xff] %v235
                %v237 = vld [vmem:[%s219 + $0x80] sm:$0xff]
                %238 = vst [vmem:[%s220 + $0x40] sm:$0xff] %v237
                %v239 = vld [vmem:[%s219 + $0x90] sm:$0xff]
                %240 = vst [vmem:[%s220 + $0x48] sm:$0xff] %v239
                %v241 = vld [vmem:[%s219 + $0xa0] sm:$0xff]
                %242 = vst [vmem:[%s220 + $0x50] sm:$0xff] %v241
                %v243 = vld [vmem:[%s219 + $0xb0] sm:$0xff]
                %244 = vst [vmem:[%s220 + $0x58] sm:$0xff] %v243
                %v245 = vld [vmem:[%s219 + $0xc0] sm:$0xff]
                %246 = vst [vmem:[%s220 + $0x60] sm:$0xff] %v245
                %v247 = vld [vmem:[%s219 + $0xd0] sm:$0xff]
                %248 = vst [vmem:[%s220 + $0x68] sm:$0xff] %v247
                %v249 = vld [vmem:[%s219 + $0xe0] sm:$0xff]
                %250 = vst [vmem:[%s220 + $0x70] sm:$0xff] %v249
                %v251 = vld [vmem:[%s219 + $0xf0] sm:$0xff]
                %252 = vst [vmem:[%s220 + $0x78] sm:$0xff] %v251
                %v253 = vld [vmem:[%s219 + $0x100] sm:$0xff]
                %254 = vst [vmem:[%s220 + $0x80] sm:$0xff] %v253
                %v255 = vld [vmem:[%s219 + $0x110] sm:$0xff]
                %256 = vst [vmem:[%s220 + $0x88] sm:$0xff] %v255
                %v257 = vld [vmem:[%s219 + $0x120] sm:$0xff]
                %258 = vst [vmem:[%s220 + $0x90] sm:$0xff] %v257
                %v259 = vld [vmem:[%s219 + $0x130] sm:$0xff]
                %260 = vst [vmem:[%s220 + $0x98] sm:$0xff] %v259
                %v261 = vld [vmem:[%s219 + $0x140] sm:$0xff]
                %262 = vst [vmem:[%s220 + $0xa0] sm:$0xff] %v261
                %v263 = vld [vmem:[%s219 + $0x150] sm:$0xff]
                %264 = vst [vmem:[%s220 + $0xa8] sm:$0xff] %v263
                %v265 = vld [vmem:[%s219 + $0x160] sm:$0xff]
                %266 = vst [vmem:[%s220 + $0xb0] sm:$0xff] %v265
                %v267 = vld [vmem:[%s219 + $0x170] sm:$0xff]
                %268 = vst [vmem:[%s220 + $0xb8] sm:$0xff] %v267
                %v269 = vld [vmem:[%s219 + $0x180] sm:$0xff]
                %270 = vst [vmem:[%s220 + $0xc0] sm:$0xff] %v269
                %v271 = vld [vmem:[%s219 + $0x190] sm:$0xff]
                %272 = vst [vmem:[%s220 + $0xc8] sm:$0xff] %v271
                %v273 = vld [vmem:[%s219 + $0x1a0] sm:$0xff]
                %274 = vst [vmem:[%s220 + $0xd0] sm:$0xff] %v273
                %v275 = vld [vmem:[%s219 + $0x1b0] sm:$0xff]
                %276 = vst [vmem:[%s220 + $0xd8] sm:$0xff] %v275
                %v277 = vld [vmem:[%s219 + $0x1c0] sm:$0xff]
                %278 = vst [vmem:[%s220 + $0xe0] sm:$0xff] %v277
                %v279 = vld [vmem:[%s219 + $0x1d0] sm:$0xff]
                %280 = vst [vmem:[%s220 + $0xe8] sm:$0xff] %v279
                %v281 = vld [vmem:[%s219 + $0x1e0] sm:$0xff]
                %282 = vst [vmem:[%s220 + $0xf0] sm:$0xff] %v281
                %v283 = vld [vmem:[%s219 + $0x1f0] sm:$0xff]
                %284 = vst [vmem:[%s220 + $0xf8] sm:$0xff] %v283
                %v285 = vld [vmem:[%s219 + $0x200] sm:$0xff]
                %286 = vst [vmem:[%s220 + $0x100] sm:$0xff] %v285
                %v287 = vld [vmem:[%s219 + $0x210] sm:$0xff]
                %288 = vst [vmem:[%s220 + $0x108] sm:$0xff] %v287
                %v289 = vld [vmem:[%s219 + $0x220] sm:$0xff]
                %290 = vst [vmem:[%s220 + $0x110] sm:$0xff] %v289
                %v291 = vld [vmem:[%s219 + $0x230] sm:$0xff]
                %292 = vst [vmem:[%s220 + $0x118] sm:$0xff] %v291
                %v293 = vld [vmem:[%s219 + $0x240] sm:$0xff]
                %294 = vst [vmem:[%s220 + $0x120] sm:$0xff] %v293
                %v295 = vld [vmem:[%s219 + $0x250] sm:$0xff]
                %296 = vst [vmem:[%s220 + $0x128] sm:$0xff] %v295
                %v297 = vld [vmem:[%s219 + $0x260] sm:$0xff]
                %298 = vst [vmem:[%s220 + $0x130] sm:$0xff] %v297
                %v299 = vld [vmem:[%s219 + $0x270] sm:$0xff]
                %300 = vst [vmem:[%s220 + $0x138] sm:$0xff] %v299
                %v301 = vld [vmem:[%s219 + $0x280] sm:$0xff]
                %302 = vst [vmem:[%s220 + $0x140] sm:$0xff] %v301
                %v303 = vld [vmem:[%s219 + $0x290] sm:$0xff]
                %304 = vst [vmem:[%s220 + $0x148] sm:$0xff] %v303
                %v305 = vld [vmem:[%s219 + $0x2a0] sm:$0xff]
                %306 = vst [vmem:[%s220 + $0x150] sm:$0xff] %v305
                %v307 = vld [vmem:[%s219 + $0x2b0] sm:$0xff]
                %308 = vst [vmem:[%s220 + $0x158] sm:$0xff] %v307
                %v309 = vld [vmem:[%s219 + $0x2c0] sm:$0xff]
                %310 = vst [vmem:[%s220 + $0x160] sm:$0xff] %v309
                %v311 = vld [vmem:[%s219 + $0x2d0] sm:$0xff]
                %312 = vst [vmem:[%s220 + $0x168] sm:$0xff] %v311
                %v313 = vld [vmem:[%s219 + $0x2e0] sm:$0xff]
                %314 = vst [vmem:[%s220 + $0x170] sm:$0xff] %v313
                %v315 = vld [vmem:[%s219 + $0x2f0] sm:$0xff]
                %316 = vst [vmem:[%s220 + $0x178] sm:$0xff] %v315
                %v317 = vld [vmem:[%s219 + $0x300] sm:$0xff]
                %318 = vst [vmem:[%s220 + $0x180] sm:$0xff] %v317
                %v319 = vld [vmem:[%s219 + $0x310] sm:$0xff]
                %320 = vst [vmem:[%s220 + $0x188] sm:$0xff] %v319
                %v321 = vld [vmem:[%s219 + $0x320] sm:$0xff]
                %322 = vst [vmem:[%s220 + $0x190] sm:$0xff] %v321
                %v323 = vld [vmem:[%s219 + $0x330] sm:$0xff]
                %324 = vst [vmem:[%s220 + $0x198] sm:$0xff] %v323
                %v325 = vld [vmem:[%s219 + $0x340] sm:$0xff]
                %326 = vst [vmem:[%s220 + $0x1a0] sm:$0xff] %v325
                %v327 = vld [vmem:[%s219 + $0x350] sm:$0xff]
                %328 = vst [vmem:[%s220 + $0x1a8] sm:$0xff] %v327
                %v329 = vld [vmem:[%s219 + $0x360] sm:$0xff]
                %330 = vst [vmem:[%s220 + $0x1b0] sm:$0xff] %v329
                %v331 = vld [vmem:[%s219 + $0x370] sm:$0xff]
                %332 = vst [vmem:[%s220 + $0x1b8] sm:$0xff] %v331
              $region53: #{deepcov_forward.1} parent=47 // loop_footer
                %s218 = sadd.s32 1, %s214
              $region54: #{deepcov_forward.1} parent=47 // loop_footer_branch
                %213 = sbr.rel target = $region50
              $region55: #{deepcov_forward.1} parent=47 // loop_exit
                _
            $region48: #{deepcov_forward.1} parent=39 // pred_fallthru
              _
          $region40: #{deepcov_forward.1} parent=35 // pred_fallthru
            _
          %457 = vnop
        $region36: #{deepcov_forward.1} parent=31 // pred_fallthru
          _
      $region32: #{deepcov_forward.1} parent=5 // pred_fallthru
        _
      %p458 = scmp.le.s32.totalorder 1, %s12
      %p459 = scmp.lt.s32.totalorder %s12, 5
      %p460 = pnand %p458, %p459
      %p461 = pneg %p460
      // Predicated region
      $region71: #{deepcov_forward.1} parent=5 // pred_check
        _
      $region72: #{deepcov_forward.1} parent=5 // pred_check_branch
        %463 = sbr.rel (%p460) target = $region74
      $region73: #{deepcov_forward.1} parent=5 // pred_region
        %s464 = ssub.s32 %s12, 1
        %s465 = sand.u32 %s39, 1
        %s466 = sand.u32 %s39, 1
        %s467 = smul.addr %s466, 448
        %s468 = scalar_lea.vmem [#allocation3], %s467
        // Predicated region
        $region75: #{deepcov_forward.1} parent=73 // pred_check
          %p469 = pneg %p52
        $region76: #{deepcov_forward.1} parent=73 // pred_check_branch
          %471 = sbr.rel (%p469) target = $region78
        $region77: #{deepcov_forward.1} parent=73 // pred_region
          _
        $region78: #{deepcov_forward.1} parent=73 // pred_fallthru
          _
        %s472 = sand.u32 %s39, 1
        %s473 = sand.u32 %s39, 1
        %s474 = smul.addr %s473, 448
        %s475 = scalar_lea.vmem [#allocation3], %s474
        %p476 = pneg %p52
        %p477 = pneg %p49
        %p478 = pneg %p73
        %p479 = pneg %p70
        %p480 = pneg %p94
        %p481 = pneg %p91
        %p482 = pneg %p115
        %p483 = pneg %p112
        %p484 = pneg %p136
        %p485 = pneg %p133
        %p486 = pneg %p164
        %p487 = pneg %p161
        %p488 = scmp.lt.s32.totalorder %s21, 1
        %s489 = scalar_select %p488, %s21, 1
        %p490 = scmp.lt.s32.totalorder %s22, 1
        %s491 = scalar_select %p490, %s22, 1
        %s492 = smul.addr %s489, 2
        %s493 = sadd.s32 %s491, %s492
        %s494 = scalar_lea.vmem %s5, %s493
        %p495 = scmp.lt.s32.totalorder %s21, 1
        %s496 = scalar_select %p495, %s21, 1
        %p497 = scmp.lt.s32.totalorder %s22, 1
        %s498 = scalar_select %p497, %s22, 1
        %s499 = smul.addr %s496, 2
        %s500 = sadd.s32 %s498, %s499
        %s501 = scalar_lea.vmem %s5, %s500
        %v503 = vld [vmem:[%s468] sm:$0xff]
        %v504 = vld [vmem:[%s468 + $0x8] sm:$0xff]
        %v505 = vld [vmem:[%s468 + $0x10] sm:$0xff]
        %v506 = vld [vmem:[%s468 + $0x18] sm:$0xff]
        %v507 = vld [vmem:[%s468 + $0x20] sm:$0xff]
        %v508 = vld [vmem:[%s468 + $0x28] sm:$0xff]
        %v509 = vld [vmem:[%s468 + $0x30] sm:$0xff]
        %v510 = vld [vmem:[%s468 + $0x38] sm:$0xff]
        %v511 = vld [vmem:[%s468 + $0x40] sm:$0xff]
        %v512 = vld [vmem:[%s468 + $0x48] sm:$0xff]
        %v513 = vld [vmem:[%s468 + $0x50] sm:$0xff]
        %v514 = vld [vmem:[%s468 + $0x58] sm:$0xff]
        %v515 = vld [vmem:[%s468 + $0x60] sm:$0xff]
        %v516 = vld [vmem:[%s468 + $0x68] sm:$0xff]
        %v517 = vld [vmem:[%s468 + $0x70] sm:$0xff]
        %v518 = vld [vmem:[%s468 + $0x78] sm:$0xff]
        %v519 = vld [vmem:[%s468 + $0x80] sm:$0xff]
        %v520 = vld [vmem:[%s468 + $0x88] sm:$0xff]
        %v521 = vld [vmem:[%s468 + $0x90] sm:$0xff]
        %v522 = vld [vmem:[%s468 + $0x98] sm:$0xff]
        %v523 = vld [vmem:[%s468 + $0xa0] sm:$0xff]
        %v524 = vld [vmem:[%s468 + $0xa8] sm:$0xff]
        %v525 = vld [vmem:[%s468 + $0xb0] sm:$0xff]
        %v526 = vld [vmem:[%s468 + $0xb8] sm:$0xff]
        %v527 = vld [vmem:[%s468 + $0xc0] sm:$0xff]
        %v528 = vld [vmem:[%s468 + $0xc8] sm:$0xff]
        %v529 = vld [vmem:[%s468 + $0xd0] sm:$0xff]
        %v530 = vld [vmem:[%s468 + $0xd8] sm:$0xff]
        %v531 = vld [vmem:[%s468 + $0xe0] sm:$0xff]
        %v532 = vld [vmem:[%s468 + $0xe8] sm:$0xff]
        %v533 = vld [vmem:[%s468 + $0xf0] sm:$0xff]
        %v534 = vld [vmem:[%s468 + $0xf8] sm:$0xff]
        %v535 = vld [vmem:[%s468 + $0x100] sm:$0xff]
        %v536 = vld [vmem:[%s468 + $0x108] sm:$0xff]
        %v537 = vld [vmem:[%s468 + $0x110] sm:$0xff]
        %v538 = vld [vmem:[%s468 + $0x118] sm:$0xff]
        %v539 = vld [vmem:[%s468 + $0x120] sm:$0xff]
        %v540 = vld [vmem:[%s468 + $0x128] sm:$0xff]
        %v541 = vld [vmem:[%s468 + $0x130] sm:$0xff]
        %v542 = vld [vmem:[%s468 + $0x138] sm:$0xff]
        %v543 = vld [vmem:[%s468 + $0x140] sm:$0xff]
        %v544 = vld [vmem:[%s468 + $0x148] sm:$0xff]
        %v545 = vld [vmem:[%s468 + $0x150] sm:$0xff]
        %v546 = vld [vmem:[%s468 + $0x158] sm:$0xff]
        %v547 = vld [vmem:[%s468 + $0x160] sm:$0xff]
        %v548 = vld [vmem:[%s468 + $0x168] sm:$0xff]
        %v549 = vld [vmem:[%s468 + $0x170] sm:$0xff]
        %v550 = vld [vmem:[%s468 + $0x178] sm:$0xff]
        %v551 = vld [vmem:[%s468 + $0x180] sm:$0xff]
        %v552 = vld [vmem:[%s468 + $0x188] sm:$0xff]
        %v553 = vld [vmem:[%s468 + $0x190] sm:$0xff]
        %v554 = vld [vmem:[%s468 + $0x198] sm:$0xff]
        %v555 = vld [vmem:[%s468 + $0x1a0] sm:$0xff]
        %v556 = vld [vmem:[%s468 + $0x1a8] sm:$0xff]
        %v557 = vld [vmem:[%s468 + $0x1b0] sm:$0xff]
        %v558 = vld [vmem:[%s468 + $0x1b8] sm:$0x1]
        %v559 = vpack.c.bf16 %v504, %v503
        %v560 = vpack.c.bf16 %v506, %v505
        %v561 = vpack.c.bf16 %v508, %v507
        %v562 = vpack.c.bf16 %v510, %v509
        %v563 = vpack.c.bf16 %v512, %v511
        %v564 = vpack.c.bf16 %v514, %v513
        %v565 = vpack.c.bf16 %v516, %v515
        %v566 = vpack.c.bf16 %v518, %v517
        %v567 = vpack.c.bf16 %v520, %v519
        %v568 = vpack.c.bf16 %v522, %v521
        %v569 = vpack.c.bf16 %v524, %v523
        %v570 = vpack.c.bf16 %v526, %v525
        %v571 = vpack.c.bf16 %v528, %v527
        %v572 = vpack.c.bf16 %v530, %v529
        %v573 = vpack.c.bf16 %v532, %v531
        %v574 = vpack.c.bf16 %v534, %v533
        %v575 = vpack.c.bf16 %v536, %v535
        %v576 = vpack.c.bf16 %v538, %v537
        %v577 = vpack.c.bf16 %v540, %v539
        %v578 = vpack.c.bf16 %v542, %v541
        %v579 = vpack.c.bf16 %v544, %v543
        %v580 = vpack.c.bf16 %v546, %v545
        %v581 = vpack.c.bf16 %v548, %v547
        %v582 = vpack.c.bf16 %v550, %v549
        %v583 = vpack.c.bf16 %v552, %v551
        %v584 = vpack.c.bf16 %v554, %v553
        %v585 = vpack.c.bf16 %v556, %v555
        %v586 = vpack.c.bf16 %v558, %v557
        %v587 = vld [vmem:[%s1] sm:$0xff]
        %v588 = vld [vmem:[%s1 + $0x8] sm:$0xff]
        %v589 = vld [vmem:[%s1 + $0x10] sm:$0xff]
        %v590 = vld [vmem:[%s1 + $0x18] sm:$0xff]
        %v591 = vld [vmem:[%s1 + $0x20] sm:$0xff]
        %v592 = vld [vmem:[%s1 + $0x28] sm:$0xff]
        %v593 = vld [vmem:[%s1 + $0x30] sm:$0xff]
        %v594 = vld [vmem:[%s1 + $0x38] sm:$0xff]
        %v595 = vld [vmem:[%s1 + $0x40] sm:$0xff]
        %v596 = vld [vmem:[%s1 + $0x48] sm:$0xff]
        %v597 = vld [vmem:[%s1 + $0x50] sm:$0xff]
        %v598 = vld [vmem:[%s1 + $0x58] sm:$0xff]
        %v599 = vld [vmem:[%s1 + $0x60] sm:$0xff]
        %v600 = vld [vmem:[%s1 + $0x68] sm:$0xff]
        %v601 = vld [vmem:[%s1 + $0x70] sm:$0xff]
        %v602 = vld [vmem:[%s1 + $0x78] sm:$0xff]
        %v603 = vld [vmem:[%s1 + $0x80] sm:$0xff]
        %v604 = vld [vmem:[%s1 + $0x88] sm:$0xff]
        %v605 = vld [vmem:[%s1 + $0x90] sm:$0xff]
        %v606 = vld [vmem:[%s1 + $0x98] sm:$0xff]
        %v607 = vld [vmem:[%s1 + $0xa0] sm:$0xff]
        %v608 = vld [vmem:[%s1 + $0xa8] sm:$0xff]
        %v609 = vld [vmem:[%s1 + $0xb0] sm:$0xff]
        %v610 = vld [vmem:[%s1 + $0xb8] sm:$0xff]
        %v611 = vld [vmem:[%s1 + $0xc0] sm:$0xff]
        %v612 = vld [vmem:[%s1 + $0xc8] sm:$0xff]
        %v613 = vld [vmem:[%s1 + $0xd0] sm:$0xff]
        %v614 = vld [vmem:[%s1 + $0xd8] sm:$0xff]
        %v615 = vld [vmem:[%s1 + $0xe0] sm:$0xff]
        %v616 = vld [vmem:[%s1 + $0xe8] sm:$0xff]
        %v617 = vld [vmem:[%s1 + $0xf0] sm:$0xff]
        %v618 = vld [vmem:[%s1 + $0xf8] sm:$0xff]
        %v619 = vld [vmem:[%s2] sm:$0xff]
        %v620 = vld [vmem:[%s2 + $0x8] sm:$0xff]
        %v621 = vld [vmem:[%s2 + $0x10] sm:$0xff]
        %v622 = vld [vmem:[%s2 + $0x18] sm:$0xff]
        %v623 = vld [vmem:[%s2 + $0x20] sm:$0xff]
        %v624 = vld [vmem:[%s2 + $0x28] sm:$0xff]
        %v625 = vld [vmem:[%s2 + $0x30] sm:$0xff]
        %v626 = vld [vmem:[%s2 + $0x38] sm:$0xff]
        %v627 = vld [vmem:[%s2 + $0x40] sm:$0xff]
        %v628 = vld [vmem:[%s2 + $0x48] sm:$0xff]
        %v629 = vld [vmem:[%s2 + $0x50] sm:$0xff]
        %v630 = vld [vmem:[%s2 + $0x58] sm:$0xff]
        %v631 = vld [vmem:[%s2 + $0x60] sm:$0xff]
        %v632 = vld [vmem:[%s2 + $0x68] sm:$0xff]
        %v633 = vld [vmem:[%s2 + $0x70] sm:$0xff]
        %v634 = vld [vmem:[%s2 + $0x78] sm:$0xff]
        %636 = vset.pattern.permute.xlu0 0
        %637 = vperm.xlu0 %636, %v619
        %v638 = vpop.permute.xlu0 %637
        %641 = vset.pattern.permute.xlu0 0
        %642 = vperm.xlu0 %641, %v620
        %v643 = vpop.permute.xlu0 %642
        %646 = vset.pattern.permute.xlu0 0
        %647 = vperm.xlu0 %646, %v621
        %v648 = vpop.permute.xlu0 %647
        %651 = vset.pattern.permute.xlu0 0
        %652 = vperm.xlu0 %651, %v622
        %v653 = vpop.permute.xlu0 %652
        %656 = vset.pattern.permute.xlu0 0
        %657 = vperm.xlu0 %656, %v623
        %v658 = vpop.permute.xlu0 %657
        %661 = vset.pattern.permute.xlu0 0
        %662 = vperm.xlu0 %661, %v624
        %v663 = vpop.permute.xlu0 %662
        %666 = vset.pattern.permute.xlu0 0
        %667 = vperm.xlu0 %666, %v625
        %v668 = vpop.permute.xlu0 %667
        %671 = vset.pattern.permute.xlu0 0
        %672 = vperm.xlu0 %671, %v626
        %v673 = vpop.permute.xlu0 %672
        %676 = vset.pattern.permute.xlu0 0
        %677 = vperm.xlu0 %676, %v627
        %v678 = vpop.permute.xlu0 %677
        %681 = vset.pattern.permute.xlu0 0
        %682 = vperm.xlu0 %681, %v628
        %v683 = vpop.permute.xlu0 %682
        %686 = vset.pattern.permute.xlu0 0
        %687 = vperm.xlu0 %686, %v629
        %v688 = vpop.permute.xlu0 %687
        %691 = vset.pattern.permute.xlu0 0
        %692 = vperm.xlu0 %691, %v630
        %v693 = vpop.permute.xlu0 %692
        %696 = vset.pattern.permute.xlu0 0
        %697 = vperm.xlu0 %696, %v631
        %v698 = vpop.permute.xlu0 %697
        %701 = vset.pattern.permute.xlu0 0
        %702 = vperm.xlu0 %701, %v632
        %v703 = vpop.permute.xlu0 %702
        %706 = vset.pattern.permute.xlu0 0
        %707 = vperm.xlu0 %706, %v633
        %v708 = vpop.permute.xlu0 %707
        %711 = vset.pattern.permute.xlu0 0
        %712 = vperm.xlu0 %711, %v634
        %v713 = vpop.permute.xlu0 %712
        %v747 = vunpack.c.l.b16 %v587
        %v748 = vunpack.c.h.b16 %v587
        %v749 = vunpack.c.l.b16 %v588
        %v750 = vunpack.c.h.b16 %v588
        %v751 = vunpack.c.l.b16 %v589
        %v752 = vunpack.c.h.b16 %v589
        %v753 = vunpack.c.l.b16 %v590
        %v754 = vunpack.c.h.b16 %v590
        %v755 = vunpack.c.l.b16 %v591
        %v756 = vunpack.c.h.b16 %v591
        %v757 = vunpack.c.l.b16 %v592
        %v758 = vunpack.c.h.b16 %v592
        %v759 = vunpack.c.l.b16 %v593
        %v760 = vunpack.c.h.b16 %v593
        %v761 = vunpack.c.l.b16 %v594
        %v762 = vunpack.c.h.b16 %v594
        %v763 = vunpack.c.l.b16 %v595
        %v764 = vunpack.c.h.b16 %v595
        %v765 = vunpack.c.l.b16 %v596
        %v766 = vunpack.c.h.b16 %v596
        %v767 = vunpack.c.l.b16 %v597
        %v768 = vunpack.c.h.b16 %v597
        %v769 = vunpack.c.l.b16 %v598
        %v770 = vunpack.c.h.b16 %v598
        %v771 = vunpack.c.l.b16 %v599
        %v772 = vunpack.c.h.b16 %v599
        %v773 = vunpack.c.l.b16 %v600
        %v774 = vunpack.c.h.b16 %v600
        %v775 = vunpack.c.l.b16 %v601
        %v776 = vunpack.c.h.b16 %v601
        %v777 = vunpack.c.l.b16 %v602
        %v778 = vunpack.c.h.b16 %v602
        %v779 = vunpack.c.l.b16 %v603
        %v780 = vunpack.c.h.b16 %v603
        %v781 = vunpack.c.l.b16 %v604
        %v782 = vunpack.c.h.b16 %v604
        %v783 = vunpack.c.l.b16 %v605
        %v784 = vunpack.c.h.b16 %v605
        %v785 = vunpack.c.l.b16 %v606
        %v786 = vunpack.c.h.b16 %v606
        %v787 = vunpack.c.l.b16 %v607
        %v788 = vunpack.c.h.b16 %v607
        %v789 = vunpack.c.l.b16 %v608
        %v790 = vunpack.c.h.b16 %v608
        %v791 = vunpack.c.l.b16 %v609
        %v792 = vunpack.c.h.b16 %v609
        %v793 = vunpack.c.l.b16 %v610
        %v794 = vunpack.c.h.b16 %v610
        %v795 = vunpack.c.l.b16 %v611
        %v796 = vunpack.c.h.b16 %v611
        %v797 = vunpack.c.l.b16 %v612
        %v798 = vunpack.c.h.b16 %v612
        %v799 = vunpack.c.l.b16 %v613
        %v800 = vunpack.c.h.b16 %v613
        %v801 = vunpack.c.l.b16 %v614
        %v802 = vunpack.c.h.b16 %v614
        %v803 = vunpack.c.l.b16 %v615
        %v804 = vunpack.c.h.b16 %v615
        %v805 = vunpack.c.l.b16 %v616
        %v806 = vunpack.c.h.b16 %v616
        %v807 = vunpack.c.l.b16 %v617
        %v808 = vunpack.c.h.b16 %v617
        %v809 = vunpack.c.l.b16 %v618
        %v810 = vunpack.c.h.b16 %v618
        %v811 = vpack.c.b16 %v751, %v747
        %v812 = vpack.c.b16 %v752, %v748
        %v813 = vpack.c.b16 %v753, %v749
        %v814 = vpack.c.b16 %v754, %v750
        %v815 = vpack.c.b16 %v759, %v755
        %v816 = vpack.c.b16 %v760, %v756
        %v817 = vpack.c.b16 %v761, %v757
        %v818 = vpack.c.b16 %v762, %v758
        %v819 = vpack.c.b16 %v767, %v763
        %v820 = vpack.c.b16 %v768, %v764
        %v821 = vpack.c.b16 %v769, %v765
        %v822 = vpack.c.b16 %v770, %v766
        %v823 = vpack.c.b16 %v775, %v771
        %v824 = vpack.c.b16 %v776, %v772
        %v825 = vpack.c.b16 %v777, %v773
        %v826 = vpack.c.b16 %v778, %v774
        %v827 = vpack.c.b16 %v783, %v779
        %v828 = vpack.c.b16 %v784, %v780
        %v829 = vpack.c.b16 %v785, %v781
        %v830 = vpack.c.b16 %v786, %v782
        %v831 = vpack.c.b16 %v791, %v787
        %v832 = vpack.c.b16 %v792, %v788
        %v833 = vpack.c.b16 %v793, %v789
        %v834 = vpack.c.b16 %v794, %v790
        %v835 = vpack.c.b16 %v799, %v795
        %v836 = vpack.c.b16 %v800, %v796
        %v837 = vpack.c.b16 %v801, %v797
        %v838 = vpack.c.b16 %v802, %v798
        %v839 = vpack.c.b16 %v807, %v803
        %v840 = vpack.c.b16 %v808, %v804
        %v841 = vpack.c.b16 %v809, %v805
        %v842 = vpack.c.b16 %v810, %v806
        %vm867 = vcmask 465920
        %v869 = vsel %vm867, %v814, 0
        %v872 = vsel %vm867, %v818, 0
        %v875 = vsel %vm867, %v822, 0
        %v878 = vsel %vm867, %v826, 0
        %v881 = vsel %vm867, %v830, 0
        %v884 = vsel %vm867, %v834, 0
        %v887 = vsel %vm867, %v838, 0
        %v890 = vsel %vm867, %v842, 0
        %vm892 = vcmask 1043456
        %vm893 = vcmask 1044480
        %v894 = vsel %vm892, 4294967295, 65535
        %v895 = vsel %vm893, %v894, 0
        %v897 = vand.u32 %v586, %v895
        %899 = vmatprep.subr.bf16.mxu0 0
        %900 = vmatpush1.bf16.msra.mxu0 %v559
        %901 = vmatprep.subr.bf16.mxu0 0
        %902 = vmatpush1.bf16.msra.mxu0 %v560
        %903 = vmatprep.subr.bf16.mxu0 0
        %904 = vmatpush1.bf16.msra.mxu0 %v561
        %905 = vmatprep.subr.bf16.mxu0 0
        %906 = vmatpush1.bf16.msra.mxu0 %v562
        %907 = vmatprep.subr.bf16.mxu0 0
        %908 = vmatpush1.bf16.msra.mxu0 %v563
        %909 = vmatprep.subr.bf16.mxu0 0
        %910 = vmatpush1.bf16.msra.mxu0 %v564
        %911 = vmatprep.subr.bf16.mxu0 0
        %912 = vmatpush1.bf16.msra.mxu0 %v565
        %913 = vmatprep.subr.bf16.mxu0 0
        %914 = vmatpush1.bf16.msra.mxu0 %v566
        %915 = vmatprep.subr.bf16.mxu0 0
        %916 = vmatpush1.bf16.msra.mxu0 %v567
        %917 = vmatprep.subr.bf16.mxu0 0
        %918 = vmatpush1.bf16.msra.mxu0 %v568
        %919 = vmatprep.subr.bf16.mxu0 0
        %920 = vmatpush1.bf16.msra.mxu0 %v569
        %921 = vmatprep.subr.bf16.mxu0 0
        %922 = vmatpush1.bf16.msra.mxu0 %v570
        %923 = vmatprep.subr.bf16.mxu0 0
        %924 = vmatpush1.bf16.msra.mxu0 %v571
        %925 = vmatprep.subr.bf16.mxu0 0
        %926 = vmatpush1.bf16.msra.mxu0 %v572
        %927 = vmatprep.subr.bf16.mxu0 0
        %928 = vmatpush1.bf16.msra.mxu0 %v573
        %929 = vmatprep.subr.bf16.mxu0 0
        %930 = vmatpush1.bf16.msra.mxu0 %v574
        %931 = vmatprep.mubr.bf16.mxu0 %v812
        %932 = vmatmul.mubr.bf16.gmra.mrb[0].mxu0 %v811
        %v933 = vpop.f32.mrb[0].mxu0
        %v934 = vadd.f32 %v638, %v933
        %v935 = vpop.f32.mrb[0].mxu0
        %v936 = vpop.f32.mrb[0].mxu0
        %v937 = vadd.f32 %v643, %v936
        %v938 = vpop.f32.mrb[0].mxu0
        %939 = vmatprep.mubr.bf16.mxu0 %v816
        %940 = vmatmul.mubr.bf16.gmra.mrb[0].mxu0 %v815
        %v941 = vpop.f32.mrb[0].mxu0
        %v942 = vadd.f32 %v648, %v941
        %v943 = vpop.f32.mrb[0].mxu0
        %v944 = vpop.f32.mrb[0].mxu0
        %v945 = vadd.f32 %v653, %v944
        %v946 = vpop.f32.mrb[0].mxu0
        %947 = vmatprep.mubr.bf16.mxu0 %v820
        %948 = vmatmul.mubr.bf16.gmra.mrb[0].mxu0 %v819
        %v949 = vpop.f32.mrb[0].mxu0
        %v950 = vadd.f32 %v658, %v949
        %v951 = vpop.f32.mrb[0].mxu0
        %v952 = vpop.f32.mrb[0].mxu0
        %v953 = vadd.f32 %v663, %v952
        %v954 = vpop.f32.mrb[0].mxu0
        %955 = vmatprep.mubr.bf16.mxu0 %v824
        %956 = vmatmul.mubr.bf16.gmra.mrb[0].mxu0 %v823
        %v957 = vpop.f32.mrb[0].mxu0
        %v958 = vadd.f32 %v668, %v957
        %v959 = vpop.f32.mrb[0].mxu0
        %v960 = vpop.f32.mrb[0].mxu0
        %v961 = vadd.f32 %v673, %v960
        %v962 = vpop.f32.mrb[0].mxu0
        %963 = vmatprep.mubr.bf16.mxu0 %v828
        %964 = vmatmul.mubr.bf16.gmra.mrb[0].mxu0 %v827
        %v965 = vpop.f32.mrb[0].mxu0
        %v966 = vadd.f32 %v678, %v965
        %v967 = vpop.f32.mrb[0].mxu0
        %v968 = vpop.f32.mrb[0].mxu0
        %v969 = vadd.f32 %v683, %v968
        %v970 = vpop.f32.mrb[0].mxu0
        %971 = vmatprep.mubr.bf16.mxu0 %v832
        %972 = vmatmul.mubr.bf16.gmra.mrb[0].mxu0 %v831
        %v973 = vpop.f32.mrb[0].mxu0
        %v974 = vadd.f32 %v688, %v973
        %v975 = vpop.f32.mrb[0].mxu0
        %v976 = vpop.f32.mrb[0].mxu0
        %v977 = vadd.f32 %v693, %v976
        %v978 = vpop.f32.mrb[0].mxu0
        %979 = vmatprep.mubr.bf16.mxu0 %v836
        %980 = vmatmul.mubr.bf16.gmra.mrb[0].mxu0 %v835
        %v981 = vpop.f32.mrb[0].mxu0
        %v982 = vadd.f32 %v698, %v981
        %v983 = vpop.f32.mrb[0].mxu0
        %v984 = vpop.f32.mrb[0].mxu0
        %v985 = vadd.f32 %v703, %v984
        %v986 = vpop.f32.mrb[0].mxu0
        %987 = vmatprep.mubr.bf16.mxu0 %v840
        %988 = vmatmul.mubr.bf16.gmra.mrb[0].mxu0 %v839
        %v989 = vpop.f32.mrb[0].mxu0
        %v990 = vadd.f32 %v708, %v989
        %v991 = vpop.f32.mrb[0].mxu0
        %v992 = vpop.f32.mrb[0].mxu0
        %v993 = vadd.f32 %v713, %v992
        %v994 = vpop.f32.mrb[0].mxu0
        %995 = vdwg.mxu0
        %996 = vmatprep.subr.bf16.mxu0 0
        %997 = vmatpush1.bf16.msra.mxu0 %v575
        %998 = vmatprep.subr.bf16.mxu0 0
        %999 = vmatpush1.bf16.msra.mxu0 %v576
        %1000 = vmatprep.subr.bf16.mxu0 0
        %1001 = vmatpush1.bf16.msra.mxu0 %v577
        %1002 = vmatprep.subr.bf16.mxu0 0
        %1003 = vmatpush1.bf16.msra.mxu0 %v578
        %1004 = vmatprep.subr.bf16.mxu0 0
        %1005 = vmatpush1.bf16.msra.mxu0 %v579
        %1006 = vmatprep.subr.bf16.mxu0 0
        %1007 = vmatpush1.bf16.msra.mxu0 %v580
        %1008 = vmatprep.subr.bf16.mxu0 0
        %1009 = vmatpush1.bf16.msra.mxu0 %v581
        %1010 = vmatprep.subr.bf16.mxu0 0
        %1011 = vmatpush1.bf16.msra.mxu0 %v582
        %1012 = vmatprep.subr.bf16.mxu0 0
        %1013 = vmatpush1.bf16.msra.mxu0 %v583
        %1014 = vmatprep.subr.bf16.mxu0 0
        %1015 = vmatpush1.bf16.msra.mxu0 %v584
        %1016 = vmatprep.subr.bf16.mxu0 0
        %1017 = vmatpush1.bf16.msra.mxu0 %v585
        %1018 = vmatprep.subr.bf16.mxu0 0
        %1019 = vmatpush1.bf16.msra.mxu0 %v897
        %1020 = vmatprep.subr.bf16.mxu0 0
        %1021 = vmatpush1.bf16.msra.mxu0 0
        %1022 = vmatprep.subr.bf16.mxu0 0
        %1023 = vmatpush1.bf16.msra.mxu0 0
        %1024 = vmatprep.subr.bf16.mxu0 0
        %1025 = vmatpush1.bf16.msra.mxu0 0
        %1026 = vmatprep.subr.bf16.mxu0 0
        %1027 = vmatpush1.bf16.msra.mxu0 0
        %1028 = vmatprep.mubr.bf16.mxu0 %v869
        %1029 = vmatmul.mubr.bf16.gmra.mrb[0].mxu0 %v813
        %v1030 = vpop.f32.mrb[0].mxu0
        %v1031 = vadd.f32 %v934, %v1030
        %v1032 = vpop.f32.mrb[0].mxu0
        %v1033 = vpop.f32.mrb[0].mxu0
        %v1034 = vadd.f32 %v937, %v1033
        %v1035 = vpop.f32.mrb[0].mxu0
        %1036 = vmatprep.mubr.bf16.mxu0 %v872
        %1037 = vmatmul.mubr.bf16.gmra.mrb[0].mxu0 %v817
        %v1038 = vpop.f32.mrb[0].mxu0
        %v1039 = vadd.f32 %v942, %v1038
        %v1040 = vpop.f32.mrb[0].mxu0
        %v1041 = vpop.f32.mrb[0].mxu0
        %v1042 = vadd.f32 %v945, %v1041
        %v1043 = vpop.f32.mrb[0].mxu0
        %1044 = vmatprep.mubr.bf16.mxu0 %v875
        %1045 = vmatmul.mubr.bf16.gmra.mrb[0].mxu0 %v821
        %v1046 = vpop.f32.mrb[0].mxu0
        %v1047 = vadd.f32 %v950, %v1046
        %v1048 = vpop.f32.mrb[0].mxu0
        %v1049 = vpop.f32.mrb[0].mxu0
        %v1050 = vadd.f32 %v953, %v1049
        %v1051 = vpop.f32.mrb[0].mxu0
        %1052 = vmatprep.mubr.bf16.mxu0 %v878
        %1053 = vmatmul.mubr.bf16.gmra.mrb[0].mxu0 %v825
        %v1054 = vpop.f32.mrb[0].mxu0
        %v1055 = vadd.f32 %v958, %v1054
        %v1056 = vpop.f32.mrb[0].mxu0
        %v1057 = vpop.f32.mrb[0].mxu0
        %v1058 = vadd.f32 %v961, %v1057
        %v1059 = vpop.f32.mrb[0].mxu0
        %1060 = vmatprep.mubr.bf16.mxu0 %v881
        %1061 = vmatmul.mubr.bf16.gmra.mrb[0].mxu0 %v829
        %v1062 = vpop.f32.mrb[0].mxu0
        %v1063 = vadd.f32 %v966, %v1062
        %v1064 = vpop.f32.mrb[0].mxu0
        %v1065 = vpop.f32.mrb[0].mxu0
        %v1066 = vadd.f32 %v969, %v1065
        %v1067 = vpop.f32.mrb[0].mxu0
        %1068 = vmatprep.mubr.bf16.mxu0 %v884
        %1069 = vmatmul.mubr.bf16.gmra.mrb[0].mxu0 %v833
        %v1070 = vpop.f32.mrb[0].mxu0
        %v1071 = vadd.f32 %v974, %v1070
        %v1072 = vpop.f32.mrb[0].mxu0
        %v1073 = vpop.f32.mrb[0].mxu0
        %v1074 = vadd.f32 %v977, %v1073
        %v1075 = vpop.f32.mrb[0].mxu0
        %1076 = vmatprep.mubr.bf16.mxu0 %v887
        %1077 = vmatmul.mubr.bf16.gmra.mrb[0].mxu0 %v837
        %v1078 = vpop.f32.mrb[0].mxu0
        %v1079 = vadd.f32 %v982, %v1078
        %v1080 = vpop.f32.mrb[0].mxu0
        %v1081 = vpop.f32.mrb[0].mxu0
        %v1082 = vadd.f32 %v985, %v1081
        %v1083 = vpop.f32.mrb[0].mxu0
        %1084 = vmatprep.mubr.bf16.mxu0 %v890
        %1085 = vmatmul.mubr.bf16.gmra.mrb[0].mxu0 %v841
        %v1086 = vpop.f32.mrb[0].mxu0
        %v1087 = vadd.f32 %v990, %v1086
        %v1088 = vpop.f32.mrb[0].mxu0
        %v1089 = vpop.f32.mrb[0].mxu0
        %v1090 = vadd.f32 %v993, %v1089
        %v1091 = vpop.f32.mrb[0].mxu0
        %1092 = vdwg.mxu0
        %v1093 = vmax.f32 %v1031, %v1063
        %v1094 = vmax.f32 %v1034, %v1066
        %v1095 = vmax.f32 %v1039, %v1071
        %v1096 = vmax.f32 %v1042, %v1074
        %v1097 = vmax.f32 %v1047, %v1079
        %v1098 = vmax.f32 %v1050, %v1082
        %v1099 = vmax.f32 %v1055, %v1087
        %v1100 = vmax.f32 %v1058, %v1090
        %v1101 = vld [vmem:[%s3] sm:$0x1]
        %s1102 = sld [smem:[#allocation2]]
        %v1103 = vstv %s1102
        %vm1104 = vcmask 523264
        %v1106 = vsel %vm1104, %v1101, 0
        %1108 = vmatprep.subr.mxu0 0.0
        %1109 = vmatpush1.msra.mxu0 %v1093
        %1110 = vmatprep.subr.mxu0 0.0
        %1111 = vmatpush1.msra.mxu0 %v1094
        %1112 = vmatprep.subr.mxu0 0.0
        %1113 = vmatpush1.msra.mxu0 %v1095
        %1114 = vmatprep.subr.mxu0 0.0
        %1115 = vmatpush1.msra.mxu0 %v1096
        %1116 = vmatprep.subr.mxu0 0.0
        %1117 = vmatpush1.msra.mxu0 %v1097
        %1118 = vmatprep.subr.mxu0 0.0
        %1119 = vmatpush1.msra.mxu0 %v1098
        %1120 = vmatprep.subr.mxu0 0.0
        %1121 = vmatpush1.msra.mxu0 %v1099
        %1122 = vmatprep.subr.mxu0 0.0
        %1123 = vmatpush1.msra.mxu0 %v1100
        %1124 = vmatprep.subr.mxu0 0.0
        %1125 = vmatpush1.msra.mxu0 0.0
        %1126 = vmatprep.subr.mxu0 0.0
        %1127 = vmatpush1.msra.mxu0 0.0
        %1128 = vmatprep.subr.mxu0 0.0
        %1129 = vmatpush1.msra.mxu0 0.0
        %1130 = vmatprep.subr.mxu0 0.0
        %1131 = vmatpush1.msra.mxu0 0.0
        %1132 = vmatprep.subr.mxu0 0.0
        %1133 = vmatpush1.msra.mxu0 0.0
        %1134 = vmatprep.subr.mxu0 0.0
        %1135 = vmatpush1.msra.mxu0 0.0
        %1136 = vmatprep.subr.mxu0 0.0
        %1137 = vmatpush1.msra.mxu0 0.0
        %1138 = vmatprep.subr.mxu0 0.0
        %1139 = vmatpush1.msra.mxu0 0.0
        %1140 = vmatprep.subr.mxu0 0.0
        %1141 = vmatpush1.msra.mxu0 0.0
        %1142 = vmatprep.subr.mxu0 0.0
        %1143 = vmatpush1.msra.mxu0 0.0
        %1144 = vmatprep.subr.mxu0 0.0
        %1145 = vmatpush1.msra.mxu0 0.0
        %1146 = vmatprep.subr.mxu0 0.0
        %1147 = vmatpush1.msra.mxu0 0.0
        %1148 = vmatprep.subr.mxu0 0.0
        %1149 = vmatpush1.msra.mxu0 0.0
        %1150 = vmatprep.subr.mxu0 0.0
        %1151 = vmatpush1.msra.mxu0 0.0
        %1152 = vmatprep.subr.mxu0 0.0
        %1153 = vmatpush1.msra.mxu0 0.0
        %1154 = vmatprep.subr.mxu0 0.0
        %1155 = vmatpush1.msra.mxu0 0.0
        %1156 = vmatprep.subr.mxu0 0.0
        %1157 = vmatpush1.msra.mxu0 0.0
        %1158 = vmatprep.subr.mxu0 0.0
        %1159 = vmatpush1.msra.mxu0 0.0
        %1160 = vmatprep.subr.mxu0 0.0
        %1161 = vmatpush1.msra.mxu0 0.0
        %1162 = vmatprep.subr.mxu0 0.0
        %1163 = vmatpush1.msra.mxu0 0.0
        %1164 = vmatprep.subr.mxu0 0.0
        %1165 = vmatpush1.msra.mxu0 0.0
        %1166 = vmatprep.subr.mxu0 0.0
        %1167 = vmatpush1.msra.mxu0 0.0
        %1168 = vmatprep.subr.mxu0 0.0
        %1169 = vmatpush1.msra.mxu0 0.0
        %1170 = vmatprep.subr.mxu0 0.0
        %1171 = vmatpush1.msra.mxu0 0.0
        %1172 = vmatprep.mubr.f32.mxu0 0.0
        %1173 = vmatmul.mubr.f32.gmra.mrb[0].mxu0 %v1106
        %v1174 = vpop.f32.mrb[0].mxu0
        %v1175 = vadd.f32 %v1103, %v1174
        %v1176 = vpop.f32.mrb[0].mxu0
        %1177 = vdwg.mxu0
        %v1178 = vxor.u32 %v1175, 2147483648
        %v1179 = vmul.f32 %v1178, 1.442695
        %v1180 = vpow.pop %v1179
        %v1181 = vadd.f32 %v1180, 1.0
        %v1182 = vrcp.pop %v1181
        %v1183 = vmul.f32 1.0, %v1182
        %1184 = vst [vmem:[%s501] sm:$0x1] %v1183
        %p1185 = scmp.lt.s32.totalorder %s21, 1
        %s1186 = scalar_select %p1185, %s21, 1
        %p1187 = scmp.lt.s32.totalorder %s22, 1
        %s1188 = scalar_select %p1187, %s22, 1
        %s1189 = smul.addr %s1186, 2
        %s1190 = sadd.s32 %s1188, %s1189
        %s1191 = scalar_lea.vmem %s5, %s1190
        // Predicated region
        $region79: #{deepcov_forward.1} parent=73 // pred_check
          %p1192 = pneg %p161
        $region80: #{deepcov_forward.1} parent=73 // pred_check_branch
          %1194 = sbr.rel (%p1192) target = $region82
        $region81: #{deepcov_forward.1} parent=73 // pred_region
          _
        $region82: #{deepcov_forward.1} parent=73 // pred_fallthru
          _
      $region74: #{deepcov_forward.1} parent=5 // pred_fallthru
        _
      %p1195 = scmp.le.s32.totalorder 2, %s12
      // Predicated region
      $region83: #{deepcov_forward.1} parent=5 // pred_check
        %p1196 = pneg %p1195
      $region84: #{deepcov_forward.1} parent=5 // pred_check_branch
        %1198 = sbr.rel (%p1196) target = $region86
      $region85: #{deepcov_forward.1} parent=5 // pred_region
        %s1199 = ssub.s32 %s12, 2
        // Predicated region
        $region87: #{deepcov_forward.1} parent=85 // pred_check
          %p1200 = pneg %p167
        $region88: #{deepcov_forward.1} parent=85 // pred_check_branch
          %1202 = sbr.rel (%p1200) target = $region90
        $region89: #{deepcov_forward.1} parent=85 // pred_region
          %p1203 = scmp.lt.s32.totalorder %s23, 1
          %s1204 = scalar_select %p1203, %s23, 1
          %p1205 = scmp.lt.s32.totalorder %s24, 1
          %s1206 = scalar_select %p1205, %s24, 1
          %s1207 = smul.addr %s1204, 2
          %s1208 = sadd.s32 %s1206, %s1207
          %s1209 = scalar_lea.vmem %s5, %s1208
        $region90: #{deepcov_forward.1} parent=85 // pred_fallthru
          _
      $region86: #{deepcov_forward.1} parent=5 // pred_fallthru
        _
    $region6: #{deepcov_forward.1} parent=1 // loop_footer
      %s16 = sadd.s32 1, %s12
    $region7: #{deepcov_forward.1} parent=1 // loop_footer_branch
      %11 = sbr.rel target = $region3
    $region8: #{deepcov_forward.1} parent=1 // loop_exit
      _

</llo_original>
